<compile_context>
chip_gen: v5e
topology: v5e:2x2
jax: 0.10.0
libtpu: 0.0.40
codegen_flags: <defaults>
</compile_context>

<pallas_src>
import functools

import jax
import jax.numpy as jnp
from jax import lax
from jax.experimental import pallas as pl
from jax.experimental.pallas import tpu as pltpu

_LANES = 128
_SUBLANES = 8
_ROW_ALIGN = 16                       # sublane-tile safe for 32-bit and 16-bit dtypes
_ALIGN = _ROW_ALIGN * _LANES          # 2048 elements
_TARGET_BLOCK_BYTES = 4 * 1024 * 1024 # per input, per pipeline buffer


def _power(diff, beta):
    """|diff| ** beta with the cheapest correct lowering for the given beta."""
    b = float(beta)
    if b.is_integer():
        # Repeated multiplies on the VPU (no EUP); matches torch.pow for
        # integer exponents including negative bases.
        return lax.integer_pow(diff, int(b))
    if b > 0 and (2.0 * b).is_integer():
        # Half-integer exponent: integer_pow * sqrt -> 1 transcendental instead
        # of exp+log.  NaN for negative bases, matching non-integer torch.pow.
        k = int(b - 0.5)
        return lax.integer_pow(diff, k) * jnp.sqrt(diff)
    return diff ** jnp.float32(b)


def _logloss_block_kernel(yp_ref, yt_ref, out_ref, *, alpha, beta, use_abs,
                          block_rows, n_valid, needs_mask):
    """Per-block partial sums of log(1 + alpha * |diff|^beta)^2, folded to (8, 128)."""
    i = pl.program_id(0)

    # Cast to f32 in-register: inputs travel HBM->VMEM in their native dtype
    # (halves DMA bytes for bf16 inputs); compute is always f32.
    diff = yp_ref[...].astype(jnp.float32) - yt_ref[...].astype(jnp.float32)
    if use_abs:
        diff = jnp.abs(diff)

    term = jnp.log(1.0 + jnp.float32(alpha) * _power(diff, beta))
    term = term * term

    def _fold(t):
        # (block_rows, 128) -> (8, 128) with pure VPU vreg adds (no XLU reduce,
        # no SMEM round trip).  Lane-dense (8, 128) partial per block.
        return jnp.sum(t.reshape(block_rows // _SUBLANES, _SUBLANES, _LANES), axis=0)

    if needs_mask:
        # Invalid elements (grid-overhang garbage rows, zero-pad rows, ragged
        # lane tail) all live in the last grid block, so only it pays the mask.
        last = pl.num_programs(0) - 1

        @pl.when(i == last)
        def _():
            # Row-level compare is int32-safe (row index < n/128); only the one
            # ragged row needs a lane-level compare.
            row = lax.broadcasted_iota(jnp.int32, (block_rows, _LANES), 0)
            grow = i * block_rows + row
            full_rows = n_valid // _LANES
            rem = n_valid % _LANES
            valid = grow < full_rows
            if rem:
                lane = lax.broadcasted_iota(jnp.int32, (block_rows, _LANES), 1)
                valid = valid | ((grow == full_rows) & (lane < rem))
            out_ref[...] = _fold(jnp.where(valid, term, jnp.float32(0.0)))

        @pl.when(i != last)
        def _():
            out_ref[...] = _fold(term)
    else:
        out_ref[...] = _fold(term)


def logloss_pallas(y_pred, y_true, *, alpha, beta, use_abs=True,
                   reduction='mean', batch_first=True, max_block_rows=None):
    """Pallas implementation of LogLoss.forward."""
    assert y_pred.shape[-1] == y_true.shape[-1], \
        'Predictions and ground truth labels must have the same dimensionality.'
    if batch_first:
        assert y_pred.shape[1] == y_true.shape[1], \
            'Predictions and ground truth labels must have the same context length.'
    else:
        assert y_pred.shape[0] == y_true.shape[0], \
            'Predictions and ground truth labels must have the same context length.'
    if reduction not in ('mean', 'sum'):
        reduction = 'mean'

    yp = jnp.asarray(y_pred).reshape(-1)   # native dtype; no wrapper f32 copy
    yt = jnp.asarray(y_true).reshape(-1)
    n = yp.shape[0]

    # Pad only to the small 16x128 alignment (never to a block_rows multiple).
    pad = (-n) % _ALIGN
    if pad:
        # TODO(synk): when n % 2048 != 0 this still copies the flat tensors once;
        # a BoundedSlice / host-side ragged-tail fixup could remove that too.
        yp = jnp.pad(yp, (0, pad))
        yt = jnp.pad(yt, (0, pad))
    rows = (n + pad) // _LANES             # multiple of 16

    itemsize = max(yp.dtype.itemsize, yt.dtype.itemsize)
    cap = max(_ROW_ALIGN,
              (_TARGET_BLOCK_BYTES // (_LANES * itemsize)) // _ROW_ALIGN * _ROW_ALIGN)
    if max_block_rows is not None:
        cap = max(_ROW_ALIGN, (int(max_block_rows) // _ROW_ALIGN) * _ROW_ALIGN)
    block_rows = min(cap, rows)
    num_blocks = pl.cdiv(rows, block_rows)

    # Masking is needed only when the last grid block reads past the array
    # (unspecified contents), or when the zero padding would not contribute 0
    # (beta <= 0).  For beta > 0 the padded zeros contribute exactly 0.
    grid_overhang = (rows % block_rows) != 0
    lane_pad_matters = (pad != 0) and (float(beta) <= 0.0)
    needs_mask = grid_overhang or lane_pad_matters

    yp2 = yp.reshape(rows, _LANES)
    yt2 = yt.reshape(rows, _LANES)

    kernel = functools.partial(
        _logloss_block_kernel,
        alpha=float(alpha), beta=float(beta), use_abs=bool(use_abs),
        block_rows=block_rows, n_valid=n, needs_mask=needs_mask)

    partials = pl.pallas_call(
        kernel,
        out_shape=jax.ShapeDtypeStruct((num_blocks * _SUBLANES, _LANES), jnp.float32),
        grid_spec=pltpu.PrefetchScalarGridSpec(
            num_scalar_prefetch=0,
            grid=(num_blocks,),
            in_specs=[
                pl.BlockSpec((block_rows, _LANES), lambda i: (i, 0)),
                pl.BlockSpec((block_rows, _LANES), lambda i: (i, 0)),
            ],
            out_specs=pl.BlockSpec((_SUBLANES, _LANES), lambda i: (i, 0)),
        ),
        compiler_params=pltpu.CompilerParams(
            dimension_semantics=("parallel",),
            vmem_limit_bytes=32 * 1024 * 1024),
    )(yp2, yt2)

    # Tiny final reduce + reduction mode on the (num_blocks*8, 128) partials.
    total = jnp.sum(partials)
    if reduction == 'mean':
        total = total / jnp.float32(n)
    return total


def logloss_ref(y_pred, y_true, *, alpha, beta, use_abs=True, reduction='mean'):
    yp = jnp.asarray(y_pred, jnp.float32)
    yt = jnp.asarray(y_true, jnp.float32)
    diff = yp - yt
    if use_abs:
        diff = jnp.abs(diff)
    if float(beta).is_integer():
        powed = diff ** int(beta)
    else:
        powed = diff ** beta
    result = jnp.log(1.0 + alpha * powed) ** 2
    return jnp.mean(result) if reduction == 'mean' else jnp.sum(result)


if __name__ == "__main__":
    key = jax.random.PRNGKey(0)
    k1, k2, k3, k4 = jax.random.split(key, 4)

    ok = True

    # Small batch-first input (B, T, D) = (2, 8, 32); n = 512 (lane-aligned path).
    B, T, D = 2, 8, 32
    y_pred = jax.random.uniform(k1, (B, T, D), dtype=jnp.float32)
    y_true = jax.random.uniform(k2, (B, T, D), dtype=jnp.float32)

    configs = [
        dict(alpha=1.0, beta=2.0, use_abs=True, reduction='mean'),
        dict(alpha=1.0, beta=2.0, use_abs=True, reduction='sum'),
        dict(alpha=0.5, beta=1.5, use_abs=True, reduction='mean'),   # half-int sqrt path
        dict(alpha=0.3, beta=3.0, use_abs=False, reduction='sum'),
    ]
    for cfg in configs:
        out = jax.block_until_ready(logloss_pallas(y_pred, y_true, batch_first=True, **cfg))
        ref = logloss_ref(y_pred, y_true, **cfg)
        if not jnp.allclose(out, ref, rtol=1e-5, atol=1e-5):
            ok = False

    # Odd-shaped input (2, 10, 260) = 5200 elements with a small block cap so the
    # grid has 2 blocks and the last one overhangs -> exercises the in-kernel mask.
    y_pred2 = jax.random.uniform(k3, (2, 10, 260), dtype=jnp.float32)
    y_true2 = jax.random.uniform(k4, (2, 10, 260), dtype=jnp.float32)
    configs2 = [
        dict(alpha=1.0, beta=2.0, use_abs=True, reduction='mean'),
        dict(alpha=2.0, beta=0.0, use_abs=True, reduction='mean'),   # beta<=0 pad mask
        dict(alpha=0.5, beta=2.5, use_abs=True, reduction='sum'),    # half-int, k=2
    ]
    for cfg in configs2:
        out = jax.block_until_ready(
            logloss_pallas(y_pred2, y_true2, batch_first=True, max_block_rows=32, **cfg))
        ref = logloss_ref(y_pred2, y_true2, **cfg)
        if not jnp.allclose(out, ref, rtol=1e-5, atol=1e-5):
            ok = False

    if ok:
        print("KERNEL_OK")
</pallas_src>

<mosaic_0001>
module attributes {stable_mosaic.version = 11 : i64} {
  func.func @_logloss_block_kernel(%arg0: i32, %arg1: memref<16x128xf32, #tpu.memory_space<vmem>>, %arg2: memref<16x128xf32, #tpu.memory_space<vmem>>, %arg3: memref<8x128xf32, #tpu.memory_space<vmem>>) attributes {dimension_semantics = [#tpu.dimension_semantics<parallel>], iteration_bounds = array<i64: 1>, scalar_prefetch = 0 : i64, scratch_operands = 0 : i64, tpu.core_type = #tpu.core_type<tc>, window_params = [{transform_indices = @transform_0, window_bounds = array<i64: 16, 128>}, {transform_indices = @transform_1, window_bounds = array<i64: 16, 128>}, {transform_indices = @transform_2, window_bounds = array<i64: 8, 128>}]} {
    %c0 = arith.constant 0 : index
    %c0_0 = arith.constant 0 : index
    %0 = vector.load %arg1[%c0, %c0_0] : memref<16x128xf32, #tpu.memory_space<vmem>>, vector<16x128xf32>
    %c0_1 = arith.constant 0 : index
    %c0_2 = arith.constant 0 : index
    %1 = vector.load %arg2[%c0_1, %c0_2] : memref<16x128xf32, #tpu.memory_space<vmem>>, vector<16x128xf32>
    %2 = arith.subf %0, %1 : vector<16x128xf32>
    %3 = math.absf %2 : vector<16x128xf32>
    %4 = arith.mulf %3, %3 : vector<16x128xf32>
    %cst = arith.constant 1.000000e+00 : f32
    %5 = vector.broadcast %cst : f32 to vector<16x128xf32>
    %6 = arith.mulf %5, %4 : vector<16x128xf32>
    %cst_3 = arith.constant 1.000000e+00 : f32
    %7 = vector.broadcast %cst_3 : f32 to vector<16x128xf32>
    %8 = arith.addf %7, %6 : vector<16x128xf32>
    %9 = math.log %8 : vector<16x128xf32>
    %10 = arith.mulf %9, %9 : vector<16x128xf32>
    %11 = vector.shape_cast %10 : vector<16x128xf32> to vector<2x8x128xf32>
    %cst_4 = arith.constant dense<0.000000e+00> : vector<8x128xf32>
    %12 = vector.multi_reduction <add>, %11, %cst_4 [0] : vector<2x8x128xf32> to vector<8x128xf32>
    %c0_5 = arith.constant 0 : index
    %c0_6 = arith.constant 0 : index
    %13 = vector.load %arg3[%c0_5, %c0_6] : memref<8x128xf32, #tpu.memory_space<vmem>>, vector<8x128xf32>
    tpu.vector_store %arg3[%c0_5, %c0_6], %12 {strides = array<i32>} : memref<8x128xf32, #tpu.memory_space<vmem>>, vector<8x128xf32>,
    return
  }
  func.func @transform_0(%arg0: i32) -> (i32, i32) {
    %c0_i32 = arith.constant 0 : i32
    %c0_i32_0 = arith.constant 0 : i32
    return %arg0, %c0_i32 : i32, i32
  }
  func.func @transform_1(%arg0: i32) -> (i32, i32) {
    %c0_i32 = arith.constant 0 : i32
    %c0_i32_0 = arith.constant 0 : i32
    return %arg0, %c0_i32 : i32, i32
  }
  func.func @transform_2(%arg0: i32) -> (i32, i32) {
    %c0_i32 = arith.constant 0 : i32
    %c0_i32_0 = arith.constant 0 : i32
    return %arg0, %c0_i32 : i32, i32
  }
}

</mosaic_0001>

<llo_original>
// kernel: tpu_custom_call.1
$region0: #{tpu_custom_call.1}
  #allocation0 [shape = 'u32[]', space=smem, size = 0x4, offset = 0x4, fixed_abs, tag = 'smem constant byte address 0x4 - core index']
  #allocation1 [shape = 'u32[72,128]{1,0:T(1,128)}', space=vmem, size = 0x9000, scoped, tag = 'internal scratch']
  %s0 = inlined_call_operand.hbm [shape: f32[16,128], index: 0, kind: input, shape index: {}]
  %s1 = inlined_call_operand.hbm [shape: f32[16,128], index: 1, kind: input, shape index: {}]
  %s2 = inlined_call_operand.hbm [shape: f32[8,128], index: 2, kind: output, shape index: {}]
  %s3 = sld [smem:[#allocation0]]
  $region26: #{tpu_custom_call.1} parent=0
    _
  %s5 = ssub.s32 1, %s3
  %s6 = scalar_select 0, %s5, %s3
  $region1: #{tpu_custom_call.1} parent=0
    #allocation2 [shape = 'u8[8192]{0}', space=vmem, size = 0x2000, scoped, tag = 'input window, operand 0, single buffered']
    #allocation3 [shape = 's32[1]{0}', space=sflag, size = 0x4, scoped, tag = 'scoped memory for tpu_custom_call.1']
    #allocation4 [shape = 's32[1]{0}', space=sflag, size = 0x4, scoped, tag = 'scoped memory for tpu_custom_call.1']
    #allocation5 [shape = 'u8[8192]{0}', space=vmem, size = 0x2000, scoped, tag = 'input window, operand 1, single buffered']
    #allocation6 [shape = 's32[1]{0}', space=sflag, size = 0x4, scoped, tag = 'scoped memory for tpu_custom_call.1']
    #allocation7 [shape = 'u8[4096]{0}', space=vmem, size = 0x1000, scoped, tag = 'output window, operand 0, single buffered']
    %7 = vsyncpa [#allocation3], 0
    %8 = vsyncpa [#allocation6], 0
    %9 = vsyncpa [#allocation4], 0
    // Predicated region
    $region2: #{tpu_custom_call.1} parent=1 // pred_check
      _
    $region3: #{tpu_custom_call.1} parent=1 // pred_check_branch
      %11 = sbr.rel (0) target = $region5
    $region4: #{tpu_custom_call.1} parent=1 // pred_region
      %13 = vsyncadd [#allocation3], 0
      %s14 = sshll.u32 %s0, 4
      %s15 = int_to_ptr.hbm [resolvable:$true] %s14
      %s16 = sshll.u32 [#allocation2], 4
      %s17 = int_to_ptr.vmem [resolvable:$true] %s16
      %22 = dma.hbm_to_vmem [thread:$0]  %s15, 256, %s17, [#allocation3], 128, 128, 8
    $region5: #{tpu_custom_call.1} parent=1 // pred_fallthru
      _
    // Predicated region
    $region6: #{tpu_custom_call.1} parent=1 // pred_check
      _
    $region7: #{tpu_custom_call.1} parent=1 // pred_check_branch
      %24 = sbr.rel (0) target = $region9
    $region8: #{tpu_custom_call.1} parent=1 // pred_region
      %26 = vsyncadd [#allocation6], 0
      %s27 = sshll.u32 %s1, 4
      %s28 = int_to_ptr.hbm [resolvable:$true] %s27
      %s29 = sshll.u32 [#allocation5], 4
      %s30 = int_to_ptr.vmem [resolvable:$true] %s29
      %35 = dma.hbm_to_vmem [thread:$0]  %s28, 256, %s30, [#allocation6], 128, 128, 8
    $region9: #{tpu_custom_call.1} parent=1 // pred_fallthru
      _
    // Predicated region
    $region10: #{tpu_custom_call.1} parent=1 // pred_check
      _
    $region11: #{tpu_custom_call.1} parent=1 // pred_check_branch
      %37 = sbr.rel (0) target = $region13
    $region12: #{tpu_custom_call.1} parent=1 // pred_region
      %39 = dma.done [#allocation3], 256
    $region13: #{tpu_custom_call.1} parent=1 // pred_fallthru
      _
    // Predicated region
    $region14: #{tpu_custom_call.1} parent=1 // pred_check
      _
    $region15: #{tpu_custom_call.1} parent=1 // pred_check_branch
      %41 = sbr.rel (0) target = $region17
    $region16: #{tpu_custom_call.1} parent=1 // pred_region
      %43 = dma.done [#allocation6], 256
    $region17: #{tpu_custom_call.1} parent=1 // pred_fallthru
      _
    %v44 = vld [vmem:[#allocation2] sm:$0xff]
    %v45 = vld [vmem:[#allocation2 + $0x8] sm:$0xff]
    %v46 = vld [vmem:[#allocation5] sm:$0xff]
    %v47 = vld [vmem:[#allocation5 + $0x8] sm:$0xff]
    %v48 = vsub.f32 %v44, %v46
    %v49 = vsub.f32 %v45, %v47
    %v50 = vand.u32 2147483647, %v48
    %v51 = vand.u32 2147483647, %v49
    %v52 = vmul.f32 %v50, %v50
    %v53 = vmul.f32 %v51, %v51
    %v54 = vadd.f32 %v52, 1.0
    %v55 = vadd.f32 %v53, 1.0
    %v56 = vlog2.pop %v54
    %v57 = vmul.f32 %v56, 0.6931472
    %v58 = vlog2.pop %v55
    %v59 = vmul.f32 %v58, 0.6931472
    %v60 = vmul.f32 %v57, %v57
    %v61 = vmul.f32 %v59, %v59
    %v62 = vadd.f32 %v60, %v61
    %63 = vst [vmem:[#allocation7] sm:$0xff] %v62
    // Predicated region
    $region18: #{tpu_custom_call.1} parent=1 // pred_check
      _
    $region19: #{tpu_custom_call.1} parent=1 // pred_check_branch
      %65 = sbr.rel (0) target = $region21
    $region20: #{tpu_custom_call.1} parent=1 // pred_region
      %67 = vsyncadd [#allocation4], 0
      %s69 = sshll.u32 [#allocation7], 4
      %s70 = int_to_ptr.vmem [resolvable:$true] %s69
      %s71 = sshll.u32 %s2, 4
      %s72 = int_to_ptr.hbm [resolvable:$true] %s71
      %74 = dma.vmem_to_hbm [thread:$0]  %s70, 128, %s72, [#allocation4]
    $region21: #{tpu_custom_call.1} parent=1 // pred_fallthru
      _
    // Predicated region
    $region22: #{tpu_custom_call.1} parent=1 // pred_check
      _
    $region23: #{tpu_custom_call.1} parent=1 // pred_check_branch
      %76 = sbr.rel (0) target = $region25
    $region24: #{tpu_custom_call.1} parent=1 // pred_region
      %78 = dma.done [#allocation4], 128
    $region25: #{tpu_custom_call.1} parent=1 // pred_fallthru
      _
    %79 = vsyncpa [#allocation3], 1
    %80 = vsyncpa [#allocation6], 1
    %81 = vsyncpa [#allocation4], 1

</llo_original>
